<compile_context>
chip_gen: v6e
topology: v6e:2x2x1
jax: 0.10.0
libtpu: 0.0.40
codegen_flags: <defaults>
</compile_context>

<pallas_src>
import math

import jax
import jax.numpy as jnp
from jax.experimental import pallas as pl
from jax.experimental.pallas import tpu as pltpu


# ------------------------- interpolation weight taps -------------------------
def _bilinear_weight_matrix(in_size: int, out_size: int, src_scale=None):
    """(out_size, in_size) matrix reproducing PyTorch F.interpolate
    (mode='bilinear'/'linear', align_corners=False) along one axis.

    src_scale: source-coordinate scale; PyTorch uses 1/scale_factor when a
    scale_factor is supplied, otherwise in_size/out_size.
    """
    if src_scale is None:
        src_scale = in_size / out_size
    o = jnp.arange(out_size, dtype=jnp.float32)
    src = jnp.maximum(src_scale * (o + 0.5) - 0.5, 0.0)
    i0 = jnp.clip(jnp.floor(src).astype(jnp.int32), 0, in_size - 1)
    i1 = jnp.minimum(i0 + 1, in_size - 1)
    w1 = src - i0.astype(jnp.float32)
    w0 = 1.0 - w1
    rows = jnp.arange(out_size, dtype=jnp.int32)
    m = jnp.zeros((out_size, in_size), jnp.float32)
    m = m.at[rows, i0].add(w0)
    m = m.at[rows, i1].add(w1)
    return m


# ------------------------------- Pallas kernel ------------------------------
def _intp_kernel(x_ref, rwt_ref, rhb_ref, o_ref):
    """One grid step = two 2-D MXU matmuls and one full-block store.

    x_ref  : (bg*Hi, k*Wi)  packed input rows (k images along the lane axis)
    rwt_ref: (k*Wi, k*Wo)   kron(I_k, Rw^T)   -- W-axis interpolation
    rhb_ref: (bg*Ho, bg*Hi) kron(I_bg, Rh)    -- H-axis interpolation
    o_ref  : (bg*Ho, k*Wo)
    """
    tmp = jnp.dot(x_ref[...], rwt_ref[...], preferred_element_type=jnp.float32)
    tmp = tmp.astype(x_ref.dtype)
    y = jnp.dot(rhb_ref[...], tmp, preferred_element_type=jnp.float32)
    o_ref[...] = y.astype(o_ref.dtype)


# ---------------------------- device / block sizing -------------------------
def _tpu_vmem_and_min_steps():
    """VMEM capacity (bytes) and the minimum number of grid steps to expose."""
    vmem = 128 << 20  # v5e/v6e default
    min_steps = 1     # 1 TensorCore -> a forced split is pure overhead
    try:
        info = pltpu.get_tpu_info()
        vmem = int(getattr(info, "vmem_capacity_bytes", vmem))
    except Exception:
        pass
    try:
        kind = jax.devices()[0].device_kind.lower()
        if "v7" in kind or "7x" in kind:
            min_steps = 2  # 2 TCs/chip: keep >=2 'parallel' steps to shard
    except Exception:
        pass
    return vmem, min_steps


def _choose_bg(G, Hi, Ho, kWi, kWo, itemsize, vmem_budget, min_steps,
               kron_cap_bytes=4 << 20):
    """Largest per-step group count bg that fits the VMEM budget."""
    def need(bg):
        io = 2 * bg * (Hi * kWi + Ho * kWo) * itemsize        # double-buffered in/out
        acc = bg * (Hi + Ho) * kWo * 4                         # f32 intermediates
        wts = 2 * (kWi * kWo + bg * bg * Ho * Hi) * itemsize   # resident weights
        return io + acc + wts

    bg = 1
    for cand in range(1, G + 1):
        if need(cand) > vmem_budget:
            break
        if cand * cand * Ho * Hi * itemsize > kron_cap_bytes:
            break  # keep kron(I_bg, Rh) from growing quadratically out of hand
        bg = cand
    if min_steps > 1 and G >= min_steps:
        bg = min(bg, max(1, G // min_steps))
    if bg < G:
        # Partial-coverage blocks: keep second-minor dims sublane-aligned.
        a = 1
        while (a * Hi) % 8 or (a * Ho) % 8:
            a += 1
        bg = max(a, (bg // a) * a)
        bg = min(bg, G)
    bg = max(bg, 1)
    return bg, need(bg)


# --------------------------------- wrapper ----------------------------------
def interpolate_bilinear_nchw(x, out_hw, src_scales=(None, None)):
    """F.interpolate(x_NCHW, mode='bilinear', align_corners=False) in Pallas."""
    N, C, Hi, Wi = x.shape
    Ho, Wo = int(out_hw[0]), int(out_hw[1])
    dt = x.dtype
    itemsize = jnp.dtype(dt).itemsize
    nc = N * C

    # Per-axis tap matrices (built in f32; cast to the compute dtype below).
    rh = _bilinear_weight_matrix(Hi, Ho, src_scales[0])   # (Ho, Hi)
    rw = _bilinear_weight_matrix(Wi, Wo, src_scales[1])   # (Wo, Wi)

    # Lane packing: place k images side-by-side on the 128-lane axis when
    # Wo < 128 so the output tiles/stores are lane-dense.
    k = 1
    if Wo < 128:
        k = max(1, min(128 // Wo, nc))
        while k > 1 and nc % k:
            k -= 1
    G = nc // k
    kWi, kWo = k * Wi, k * Wo

    # One-time wrapper-side layout plumbing: (N,C,Hi,Wi) -> (G*Hi, k*Wi).
    x3 = x.reshape(nc, Hi, Wi)
    if k > 1:
        x3 = x3.reshape(G, k, Hi, Wi).transpose(0, 2, 1, 3)
    xf = x3.reshape(G * Hi, kWi)

    # Block-diagonal W-pass weight shared by every grid step.
    rwt_blk = jnp.kron(jnp.eye(k, dtype=jnp.float32), rw.T).astype(dt)  # (kWi,kWo)

    vmem_cap, min_steps = _tpu_vmem_and_min_steps()
    bg, need_bytes = _choose_bg(G, Hi, Ho, kWi, kWo, itemsize,
                                vmem_budget=vmem_cap // 2, min_steps=min_steps)

    # Block-diagonal H-pass weight: one matmul handles all bg groups at once.
    rh_blk = jnp.kron(jnp.eye(bg, dtype=jnp.float32), rh).astype(dt)    # (bg*Ho,bg*Hi)

    num_blocks = pl.cdiv(G, bg)
    # Pad input rows so every input block is fully valid (no stale-VMEM rows
    # feeding the matmuls); excess output rows of the last block are masked.
    pad_rows = num_blocks * bg * Hi - G * Hi
    if pad_rows:
        xf = jnp.pad(xf, ((0, pad_rows), (0, 0)))

    vmem_limit = int(max(32 << 20,
                         min(vmem_cap - (4 << 20), need_bytes + (4 << 20))))

    flops = 2 * nc * Hi * Wo * (Wi + Ho)
    bytes_accessed = (nc * (Hi * Wi + Ho * Wo)
                      + kWi * kWo + bg * bg * Ho * Hi) * itemsize

    out = pl.pallas_call(
        _intp_kernel,
        out_shape=jax.ShapeDtypeStruct((G * Ho, kWo), dt),
        grid=(num_blocks,),
        in_specs=[
            pl.BlockSpec((bg * Hi, kWi), lambda i: (i, 0)),
            pl.BlockSpec((kWi, kWo), lambda i: (0, 0)),        # resident weights
            pl.BlockSpec((bg * Ho, bg * Hi), lambda i: (0, 0)),  # resident weights
        ],
        out_specs=pl.BlockSpec((bg * Ho, kWo), lambda i: (i, 0)),
        compiler_params=pltpu.CompilerParams(
            dimension_semantics=("parallel",),
            vmem_limit_bytes=vmem_limit),
        cost_estimate=pl.CostEstimate(
            flops=flops, transcendentals=0, bytes_accessed=bytes_accessed),
    )(xf, rwt_blk, rh_blk)

    y = out.reshape(G, Ho, k, Wo)
    if k > 1:
        y = y.transpose(0, 2, 1, 3)
    return y.reshape(N, C, Ho, Wo)


# --------------------------------- module ----------------------------------
class IntpConv:
    """Pallas port of flowvae.base_model.IntpConv (forward only).

    Faithful to the reference: self.conv is nn.Identity(), so out_channels /
    kernel_size only set an (unused) padding attribute and the forward pass is
    a single align_corners=False interpolation.
    """

    def __init__(self, in_channels, out_channels, kernel_size,
                 size=None, scale_factor=None, mode=None):
        self.scale_factor = scale_factor
        self.size = size
        self.mode = mode
        self.padding = int((kernel_size - 1) / 2)  # parity only; conv = Identity

    def _out_and_scale(self, in_size, axis):
        if self.size is not None:
            s = self.size
            if isinstance(s, (tuple, list)):
                return int(s[axis]), None
            return int(s), None
        sf = self.scale_factor
        if isinstance(sf, (tuple, list)):
            sf = sf[axis]
        # PyTorch (recompute_scale_factor unset): out = floor(in * sf) and the
        # source-coordinate scale is 1/sf (not in/out).
        return int(math.floor(in_size * float(sf))), 1.0 / float(sf)

    def __call__(self, x):
        if self.mode == "bilinear":
            if x.ndim != 4:
                raise ValueError("mode='bilinear' expects NCHW input")
            _, _, Hi, Wi = x.shape
            Ho, sh = self._out_and_scale(Hi, 0)
            Wo, sw = self._out_and_scale(Wi, 1)
            return interpolate_bilinear_nchw(x, (Ho, Wo), (sh, sw))
        if self.mode == "linear":
            if x.ndim != 3:
                raise ValueError("mode='linear' expects NCL input")
            N, C, Li = x.shape
            Lo, sl = self._out_and_scale(Li, 0)
            out = interpolate_bilinear_nchw(x[:, :, None, :], (1, Lo), (None, sl))
            return out[:, :, 0, :]
        # TODO(synk): nearest / bicubic / trilinear are not lowered; each needs
        # its own per-axis tap matrix construction.
        raise NotImplementedError(f"mode={self.mode!r} not implemented")


# --------------------------- independent reference --------------------------
def _interp_ref_bilinear(x, Ho, Wo):
    """Gather-based bilinear (align_corners=False) reference in plain JAX."""
    def taps(in_size, out_size):
        scale = in_size / out_size
        src = jnp.maximum(
            scale * (jnp.arange(out_size, dtype=jnp.float32) + 0.5) - 0.5, 0.0)
        i0 = jnp.clip(jnp.floor(src).astype(jnp.int32), 0, in_size - 1)
        i1 = jnp.minimum(i0 + 1, in_size - 1)
        w1 = src - i0.astype(jnp.float32)
        return i0, i1, w1

    _, _, Hi, Wi = x.shape
    h0, h1, wh1 = taps(Hi, Ho)
    w0, w1_, ww1 = taps(Wi, Wo)
    xh = (x[:, :, h0, :] * (1.0 - wh1)[None, None, :, None]
          + x[:, :, h1, :] * wh1[None, None, :, None])
    y = (xh[:, :, :, w0] * (1.0 - ww1)[None, None, None, :]
         + xh[:, :, :, w1_] * ww1[None, None, None, :])
    return y


if __name__ == "__main__":
    key = jax.random.PRNGKey(0)
    # IntpConv(in_channels=4, out_channels=4, kernel_size=3,
    #          scale_factor=2, mode="bilinear") applied to x: (2, 4, 16, 16)
    x = jax.random.normal(key, (2, 4, 16, 16), dtype=jnp.float32)
    layer = IntpConv(4, 4, 3, scale_factor=2, mode="bilinear")

    out = jax.block_until_ready(layer(x))

    assert out.shape == (2, 4, 32, 32), out.shape
    assert bool(jnp.all(jnp.isfinite(out)))
    ref = _interp_ref_bilinear(x, 32, 32)
    assert bool(jnp.allclose(out, ref, rtol=2e-2, atol=2e-2)), \
        float(jnp.max(jnp.abs(out - ref)))
    print("KERNEL_OK")
</pallas_src>

<mosaic_0001>
module attributes {stable_mosaic.version = 11 : i64} {
  func.func @_intp_kernel(%arg0: i32, %arg1: memref<32x64xf32, #tpu.memory_space<vmem>>, %arg2: memref<64x128xf32, #tpu.memory_space<vmem>>, %arg3: memref<64x32xf32, #tpu.memory_space<vmem>>, %arg4: memref<64x128xf32, #tpu.memory_space<vmem>>) attributes {dimension_semantics = [#tpu.dimension_semantics<parallel>], iteration_bounds = array<i64: 1>, scalar_prefetch = 0 : i64, scratch_operands = 0 : i64, tpu.core_type = #tpu.core_type<tc>, window_params = [{transform_indices = @transform_0, window_bounds = array<i64: 32, 64>}, {pipeline_mode = #tpu.pipeline_mode<synchronous>, transform_indices = @transform_1, window_bounds = array<i64: 64, 128>}, {pipeline_mode = #tpu.pipeline_mode<synchronous>, transform_indices = @transform_2, window_bounds = array<i64: 64, 32>}, {transform_indices = @transform_3, window_bounds = array<i64: 64, 128>}]} {
    %c0 = arith.constant 0 : index
    %c0_0 = arith.constant 0 : index
    %0 = vector.load %arg1[%c0, %c0_0] : memref<32x64xf32, #tpu.memory_space<vmem>>, vector<32x64xf32>
    %c0_1 = arith.constant 0 : index
    %c0_2 = arith.constant 0 : index
    %1 = vector.load %arg2[%c0_1, %c0_2] : memref<64x128xf32, #tpu.memory_space<vmem>>, vector<64x128xf32>
    %cst = arith.constant dense<0.000000e+00> : vector<32x128xf32>
    %2 = tpu.matmul %0, %1, %cst {dimension_numbers = #tpu.dot_dimension_numbers<[1], [0], [0], [1], [0, 0, 1, 1], [], []>} : vector<32x64xf32>, vector<64x128xf32>, vector<32x128xf32> -> vector<32x128xf32>
    %c0_3 = arith.constant 0 : index
    %c0_4 = arith.constant 0 : index
    %3 = vector.load %arg3[%c0_3, %c0_4] : memref<64x32xf32, #tpu.memory_space<vmem>>, vector<64x32xf32>
    %cst_5 = arith.constant dense<0.000000e+00> : vector<64x128xf32>
    %4 = tpu.matmul %3, %2, %cst_5 {dimension_numbers = #tpu.dot_dimension_numbers<[1], [0], [0], [1], [0, 0, 1, 1], [], []>} : vector<64x32xf32>, vector<32x128xf32>, vector<64x128xf32> -> vector<64x128xf32>
    %c0_6 = arith.constant 0 : index
    %c0_7 = arith.constant 0 : index
    %5 = vector.load %arg4[%c0_6, %c0_7] : memref<64x128xf32, #tpu.memory_space<vmem>>, vector<64x128xf32>
    tpu.vector_store %arg4[%c0_6, %c0_7], %4 {strides = array<i32>} : memref<64x128xf32, #tpu.memory_space<vmem>>, vector<64x128xf32>,
    return
  }
  func.func @transform_0(%arg0: i32) -> (i32, i32) {
    %c0_i32 = arith.constant 0 : i32
    %c0_i32_0 = arith.constant 0 : i32
    return %arg0, %c0_i32 : i32, i32
  }
  func.func @transform_1(%arg0: i32) -> (i32, i32) {
    %c0_i32 = arith.constant 0 : i32
    %c0_i32_0 = arith.constant 0 : i32
    %c0_i32_1 = arith.constant 0 : i32
    return %c0_i32, %c0_i32_0 : i32, i32
  }
  func.func @transform_2(%arg0: i32) -> (i32, i32) {
    %c0_i32 = arith.constant 0 : i32
    %c0_i32_0 = arith.constant 0 : i32
    %c0_i32_1 = arith.constant 0 : i32
    return %c0_i32, %c0_i32_0 : i32, i32
  }
  func.func @transform_3(%arg0: i32) -> (i32, i32) {
    %c0_i32 = arith.constant 0 : i32
    %c0_i32_0 = arith.constant 0 : i32
    return %arg0, %c0_i32 : i32, i32
  }
}

</mosaic_0001>

<llo_original>
// kernel: tpu_custom_call.1
$region0: #{tpu_custom_call.1}
  #allocation0 [shape = 'u32[]', space=smem, size = 0x4, offset = 0x4, fixed_abs, tag = 'smem constant byte address 0x4 - core index']
  #allocation1 [shape = 'u32[144,128]{1,0:T(1,128)}', space=vmem, size = 0x12000, scoped, tag = 'internal scratch']
  %s0 = inlined_call_operand.vmem [shape: f32[32,64], index: 0, kind: input, shape index: {}]
  %s1 = inlined_call_operand.vmem [shape: f32[64,128], index: 1, kind: input, shape index: {}]
  %s2 = inlined_call_operand.vmem [shape: f32[64,32], index: 2, kind: input, shape index: {}]
  %s3 = inlined_call_operand.hbm [shape: f32[64,128], index: 3, kind: output, shape index: {}]
  %s4 = sld [smem:[#allocation0]]
  $region22: #{tpu_custom_call.1} parent=0
    _
  %s6 = ssub.s32 1, %s4
  %s7 = scalar_select 0, %s6, %s4
  $region1: #{tpu_custom_call.1} parent=0
    #allocation2 [shape = 'u8[32768]{0}', space=vmem, size = 0x8000, scoped, tag = 'output window, operand 0, single buffered']
    #allocation3 [shape = 's32[1]{0}', space=sflag, size = 0x4, scoped, tag = 'scoped memory for tpu_custom_call.1']
    %8 = vsyncpa [#allocation3], 0
    // Predicated region
    $region2: #{tpu_custom_call.1} parent=1 // pred_check
      _
    $region3: #{tpu_custom_call.1} parent=1 // pred_check_branch
      %10 = sbr.rel (0) target = $region5
    $region4: #{tpu_custom_call.1} parent=1 // pred_region
      _
    $region5: #{tpu_custom_call.1} parent=1 // pred_fallthru
      _
    // Predicated region
    $region6: #{tpu_custom_call.1} parent=1 // pred_check
      _
    $region7: #{tpu_custom_call.1} parent=1 // pred_check_branch
      %12 = sbr.rel (0) target = $region9
    $region8: #{tpu_custom_call.1} parent=1 // pred_region
      _
    $region9: #{tpu_custom_call.1} parent=1 // pred_fallthru
      _
    // Predicated region
    $region10: #{tpu_custom_call.1} parent=1 // pred_check
      _
    $region11: #{tpu_custom_call.1} parent=1 // pred_check_branch
      %14 = sbr.rel (0) target = $region13
    $region12: #{tpu_custom_call.1} parent=1 // pred_region
      _
    $region13: #{tpu_custom_call.1} parent=1 // pred_fallthru
      _
    %v15 = vld [vmem:[%s0] sm:$0xff]
    %v16 = vld [vmem:[%s0 + $0x8] sm:$0xff]
    %v17 = vld [vmem:[%s0 + $0x10] sm:$0xff]
    %v18 = vld [vmem:[%s0 + $0x18] sm:$0xff]
    %v19 = vld [vmem:[%s1] sm:$0xff]
    %v20 = vld [vmem:[%s1 + $0x8] sm:$0xff]
    %v21 = vld [vmem:[%s1 + $0x10] sm:$0xff]
    %v22 = vld [vmem:[%s1 + $0x18] sm:$0xff]
    %v23 = vld [vmem:[%s1 + $0x20] sm:$0xff]
    %v24 = vld [vmem:[%s1 + $0x28] sm:$0xff]
    %v25 = vld [vmem:[%s1 + $0x30] sm:$0xff]
    %v26 = vld [vmem:[%s1 + $0x38] sm:$0xff]
    %vm27 = vcmask 523264
    %v29 = vsel %vm27, %v15, 0
    %v32 = vsel %vm27, %v16, 0
    %v35 = vsel %vm27, %v17, 0
    %v38 = vsel %vm27, %v18, 0
    %40 = vmatprep.subr.mxu0 0.0
    %41 = vmatpush1.msra.mxu0 0.0
    %42 = vmatprep.subr.mxu0 0.0
    %43 = vmatpush1.msra.mxu0 0.0
    %44 = vmatprep.subr.mxu0 0.0
    %45 = vmatpush1.msra.mxu0 0.0
    %46 = vmatprep.subr.mxu0 0.0
    %47 = vmatpush1.msra.mxu0 0.0
    %48 = vmatprep.subr.mxu0 0.0
    %49 = vmatpush1.msra.mxu0 0.0
    %50 = vmatprep.subr.mxu0 0.0
    %51 = vmatpush1.msra.mxu0 0.0
    %52 = vmatprep.subr.mxu0 0.0
    %53 = vmatpush1.msra.mxu0 0.0
    %54 = vmatprep.subr.mxu0 0.0
    %55 = vmatpush1.msra.mxu0 0.0
    %56 = vmatprep.subr.mxu0 0.0
    %57 = vmatpush1.msra.mxu0 %v26
    %58 = vmatprep.subr.mxu0 0.0
    %59 = vmatpush1.msra.mxu0 %v25
    %60 = vmatprep.subr.mxu0 0.0
    %61 = vmatpush1.msra.mxu0 %v24
    %62 = vmatprep.subr.mxu0 0.0
    %63 = vmatpush1.msra.mxu0 %v23
    %64 = vmatprep.subr.mxu0 0.0
    %65 = vmatpush1.msra.mxu0 %v22
    %66 = vmatprep.subr.mxu0 0.0
    %67 = vmatpush1.msra.mxu0 %v21
    %68 = vmatprep.subr.mxu0 0.0
    %69 = vmatpush1.msra.mxu0 %v20
    %70 = vmatprep.subr.mxu0 0.0
    %71 = vmatpush1.msra.mxu0 %v19
    %72 = vmatprep.subr.mxu0 0.0
    %73 = vmatpush2.msra.mxu0 0.0
    %74 = vmatprep.subr.mxu0 0.0
    %75 = vmatpush2.msra.mxu0 0.0
    %76 = vmatprep.subr.mxu0 0.0
    %77 = vmatpush2.msra.mxu0 0.0
    %78 = vmatprep.subr.mxu0 0.0
    %79 = vmatpush2.msra.mxu0 0.0
    %80 = vmatprep.subr.mxu0 0.0
    %81 = vmatpush2.msra.mxu0 0.0
    %82 = vmatprep.subr.mxu0 0.0
    %83 = vmatpush2.msra.mxu0 0.0
    %84 = vmatprep.subr.mxu0 0.0
    %85 = vmatpush2.msra.mxu0 0.0
    %86 = vmatprep.subr.mxu0 0.0
    %87 = vmatpush2.msra.mxu0 0.0
    %88 = vmatprep.subr.mxu0 0.0
    %89 = vmatpush2.msra.mxu0 0.0
    %90 = vmatprep.subr.mxu0 0.0
    %91 = vmatpush2.msra.mxu0 0.0
    %92 = vmatprep.subr.mxu0 0.0
    %93 = vmatpush2.msra.mxu0 0.0
    %94 = vmatprep.subr.mxu0 0.0
    %95 = vmatpush2.msra.mxu0 0.0
    %96 = vmatprep.subr.mxu0 0.0
    %97 = vmatpush2.msra.mxu0 0.0
    %98 = vmatprep.subr.mxu0 0.0
    %99 = vmatpush2.msra.mxu0 0.0
    %100 = vmatprep.subr.mxu0 0.0
    %101 = vmatpush2.msra.mxu0 0.0
    %102 = vmatprep.subr.mxu0 0.0
    %103 = vmatpush2.msra.mxu0 0.0
    %104 = vmatprep.mubr.f32.mxu0 0.0
    %105 = vmatmul.mubr.f32.gmra.mxu0 %v29
    %v106 = vpop.f32.mrf.mxu0
    %v107 = vadd.f32 0.0, %v106
    %v108 = vpop.f32.mrf.mxu0
    %109 = vmatprep.mubr.f32.mxu0 0.0
    %110 = vmatmul.mubr.f32.gmra.mxu0 %v32
    %v111 = vpop.f32.mrf.mxu0
    %v112 = vadd.f32 0.0, %v111
    %v113 = vpop.f32.mrf.mxu0
    %114 = vmatprep.mubr.f32.mxu0 0.0
    %115 = vmatmul.mubr.f32.gmra.mxu0 %v35
    %v116 = vpop.f32.mrf.mxu0
    %v117 = vadd.f32 0.0, %v116
    %v118 = vpop.f32.mrf.mxu0
    %119 = vmatprep.mubr.f32.mxu0 0.0
    %120 = vmatmul.mubr.f32.gmra.mxu0 %v38
    %v121 = vpop.f32.mrf.mxu0
    %v122 = vadd.f32 0.0, %v121
    %v123 = vpop.f32.mrf.mxu0
    %124 = vdwg.mxu0
    %v125 = vld [vmem:[%s2] sm:$0xff]
    %v126 = vld [vmem:[%s2 + $0x8] sm:$0xff]
    %v127 = vld [vmem:[%s2 + $0x10] sm:$0xff]
    %v128 = vld [vmem:[%s2 + $0x18] sm:$0xff]
    %v129 = vld [vmem:[%s2 + $0x20] sm:$0xff]
    %v130 = vld [vmem:[%s2 + $0x28] sm:$0xff]
    %v131 = vld [vmem:[%s2 + $0x30] sm:$0xff]
    %v132 = vld [vmem:[%s2 + $0x38] sm:$0xff]
    %vm133 = vcmask 261120
    %v135 = vsel %vm133, %v125, 0
    %v138 = vsel %vm133, %v126, 0
    %v141 = vsel %vm133, %v127, 0
    %v144 = vsel %vm133, %v128, 0
    %v147 = vsel %vm133, %v129, 0
    %v150 = vsel %vm133, %v130, 0
    %v153 = vsel %vm133, %v131, 0
    %v156 = vsel %vm133, %v132, 0
    %158 = vmatprep.subr.mxu0 0.0
    %159 = vmatpush1.msra.mxu0 0.0
    %160 = vmatprep.subr.mxu0 0.0
    %161 = vmatpush1.msra.mxu0 0.0
    %162 = vmatprep.subr.mxu0 0.0
    %163 = vmatpush1.msra.mxu0 0.0
    %164 = vmatprep.subr.mxu0 0.0
    %165 = vmatpush1.msra.mxu0 0.0
    %166 = vmatprep.subr.mxu0 0.0
    %167 = vmatpush1.msra.mxu0 0.0
    %168 = vmatprep.subr.mxu0 0.0
    %169 = vmatpush1.msra.mxu0 0.0
    %170 = vmatprep.subr.mxu0 0.0
    %171 = vmatpush1.msra.mxu0 0.0
    %172 = vmatprep.subr.mxu0 0.0
    %173 = vmatpush1.msra.mxu0 0.0
    %174 = vmatprep.subr.mxu0 0.0
    %175 = vmatpush1.msra.mxu0 0.0
    %176 = vmatprep.subr.mxu0 0.0
    %177 = vmatpush1.msra.mxu0 0.0
    %178 = vmatprep.subr.mxu0 0.0
    %179 = vmatpush1.msra.mxu0 0.0
    %180 = vmatprep.subr.mxu0 0.0
    %181 = vmatpush1.msra.mxu0 0.0
    %182 = vmatprep.subr.mxu0 0.0
    %183 = vmatpush1.msra.mxu0 %v122
    %184 = vmatprep.subr.mxu0 0.0
    %185 = vmatpush1.msra.mxu0 %v117
    %186 = vmatprep.subr.mxu0 0.0
    %187 = vmatpush1.msra.mxu0 %v112
    %188 = vmatprep.subr.mxu0 0.0
    %189 = vmatpush1.msra.mxu0 %v107
    %190 = vmatprep.subr.mxu0 0.0
    %191 = vmatpush2.msra.mxu0 0.0
    %192 = vmatprep.subr.mxu0 0.0
    %193 = vmatpush2.msra.mxu0 0.0
    %194 = vmatprep.subr.mxu0 0.0
    %195 = vmatpush2.msra.mxu0 0.0
    %196 = vmatprep.subr.mxu0 0.0
    %197 = vmatpush2.msra.mxu0 0.0
    %198 = vmatprep.subr.mxu0 0.0
    %199 = vmatpush2.msra.mxu0 0.0
    %200 = vmatprep.subr.mxu0 0.0
    %201 = vmatpush2.msra.mxu0 0.0
    %202 = vmatprep.subr.mxu0 0.0
    %203 = vmatpush2.msra.mxu0 0.0
    %204 = vmatprep.subr.mxu0 0.0
    %205 = vmatpush2.msra.mxu0 0.0
    %206 = vmatprep.subr.mxu0 0.0
    %207 = vmatpush2.msra.mxu0 0.0
    %208 = vmatprep.subr.mxu0 0.0
    %209 = vmatpush2.msra.mxu0 0.0
    %210 = vmatprep.subr.mxu0 0.0
    %211 = vmatpush2.msra.mxu0 0.0
    %212 = vmatprep.subr.mxu0 0.0
    %213 = vmatpush2.msra.mxu0 0.0
    %214 = vmatprep.subr.mxu0 0.0
    %215 = vmatpush2.msra.mxu0 0.0
    %216 = vmatprep.subr.mxu0 0.0
    %217 = vmatpush2.msra.mxu0 0.0
    %218 = vmatprep.subr.mxu0 0.0
    %219 = vmatpush2.msra.mxu0 0.0
    %220 = vmatprep.subr.mxu0 0.0
    %221 = vmatpush2.msra.mxu0 0.0
    %222 = vmatprep.mubr.f32.mxu0 0.0
    %223 = vmatmul.mubr.f32.gmra.mxu0 %v135
    %v224 = vpop.f32.mrf.mxu0
    %v225 = vadd.f32 0.0, %v224
    %v226 = vpop.f32.mrf.mxu0
    %227 = vmatprep.mubr.f32.mxu0 0.0
    %228 = vmatmul.mubr.f32.gmra.mxu0 %v138
    %v229 = vpop.f32.mrf.mxu0
    %v230 = vadd.f32 0.0, %v229
    %v231 = vpop.f32.mrf.mxu0
    %232 = vmatprep.mubr.f32.mxu0 0.0
    %233 = vmatmul.mubr.f32.gmra.mxu0 %v141
    %v234 = vpop.f32.mrf.mxu0
    %v235 = vadd.f32 0.0, %v234
    %v236 = vpop.f32.mrf.mxu0
    %237 = vmatprep.mubr.f32.mxu0 0.0
    %238 = vmatmul.mubr.f32.gmra.mxu0 %v144
    %v239 = vpop.f32.mrf.mxu0
    %v240 = vadd.f32 0.0, %v239
    %v241 = vpop.f32.mrf.mxu0
    %242 = vmatprep.mubr.f32.mxu0 0.0
    %243 = vmatmul.mubr.f32.gmra.mxu0 %v147
    %v244 = vpop.f32.mrf.mxu0
    %v245 = vadd.f32 0.0, %v244
    %v246 = vpop.f32.mrf.mxu0
    %247 = vmatprep.mubr.f32.mxu0 0.0
    %248 = vmatmul.mubr.f32.gmra.mxu0 %v150
    %v249 = vpop.f32.mrf.mxu0
    %v250 = vadd.f32 0.0, %v249
    %v251 = vpop.f32.mrf.mxu0
    %252 = vmatprep.mubr.f32.mxu0 0.0
    %253 = vmatmul.mubr.f32.gmra.mxu0 %v153
    %v254 = vpop.f32.mrf.mxu0
    %v255 = vadd.f32 0.0, %v254
    %v256 = vpop.f32.mrf.mxu0
    %257 = vmatprep.mubr.f32.mxu0 0.0
    %258 = vmatmul.mubr.f32.gmra.mxu0 %v156
    %v259 = vpop.f32.mrf.mxu0
    %v260 = vadd.f32 0.0, %v259
    %v261 = vpop.f32.mrf.mxu0
    %262 = vdwg.mxu0
    %263 = vst [vmem:[#allocation2] sm:$0xff] %v225
    %264 = vst [vmem:[#allocation2 + $0x8] sm:$0xff] %v230
    %265 = vst [vmem:[#allocation2 + $0x10] sm:$0xff] %v235
    %266 = vst [vmem:[#allocation2 + $0x18] sm:$0xff] %v240
    %267 = vst [vmem:[#allocation2 + $0x20] sm:$0xff] %v245
    %268 = vst [vmem:[#allocation2 + $0x28] sm:$0xff] %v250
    %269 = vst [vmem:[#allocation2 + $0x30] sm:$0xff] %v255
    %270 = vst [vmem:[#allocation2 + $0x38] sm:$0xff] %v260
    // Predicated region
    $region14: #{tpu_custom_call.1} parent=1 // pred_check
      _
    $region15: #{tpu_custom_call.1} parent=1 // pred_check_branch
      %272 = sbr.rel (0) target = $region17
    $region16: #{tpu_custom_call.1} parent=1 // pred_region
      %s274 = ssub.s32 1024, 1024
      %275 = vsyncadd [#allocation3], %s274
      %s276 = sshll.u32 [#allocation2], 4
      %s277 = int_to_ptr.vmem [resolvable:$true] %s276
      %282 = dma.vmem_to_hbm [thread:$0]  %s277, 1024, %s3, [#allocation3], 128, 128, 8
    $region17: #{tpu_custom_call.1} parent=1 // pred_fallthru
      _
    // Predicated region
    $region18: #{tpu_custom_call.1} parent=1 // pred_check
      _
    $region19: #{tpu_custom_call.1} parent=1 // pred_check_branch
      %284 = sbr.rel (0) target = $region21
    $region20: #{tpu_custom_call.1} parent=1 // pred_region
      %285 = dma.done [#allocation3], 1024
    $region21: #{tpu_custom_call.1} parent=1 // pred_fallthru
      _
    %286 = vsyncpa [#allocation3], 1

</llo_original>
